<compile_context>
chip_gen: v5e
topology: v5e:2x2
jax: 0.10.0
libtpu: 0.0.40
codegen_flags: <defaults>
</compile_context>

<pallas_src>
import jax
import jax.numpy as jnp
from jax.experimental import pallas as pl
from jax.experimental.pallas import tpu as pltpu


# --------------------------------------------------------------------------- #
# Kernels
# --------------------------------------------------------------------------- #
def _encoder_kernel_fullk(x_ref, w_ref, o_ref):
    """Full-K (weight-stationary) path: single dot + hard_quantize per tile."""
    acc = jnp.dot(x_ref[...], w_ref[...], preferred_element_type=jnp.float32)
    # torchhd.hard_quantize: strictly positive -> +1, else (incl. 0) -> -1
    o_ref[...] = jnp.where(acc > 0.0, 1.0, -1.0).astype(o_ref.dtype)


def _encoder_kernel_ksplit(x_ref, w_ref, o_ref, acc_ref):
    """K-split path: f32 accumulation over grid axis 2, quantize at last K step."""
    k = pl.program_id(2)

    @pl.when(k == 0)
    def _init():
        acc_ref[...] = jnp.zeros_like(acc_ref)

    acc_ref[...] += jnp.dot(x_ref[...], w_ref[...],
                            preferred_element_type=jnp.float32)

    @pl.when(k == pl.num_programs(2) - 1)
    def _finalize():
        o_ref[...] = jnp.where(acc_ref[...] > 0.0, 1.0, -1.0).astype(o_ref.dtype)


# --------------------------------------------------------------------------- #
# Tiling helpers
# --------------------------------------------------------------------------- #
def _round_up(x, m):
    return (x + m - 1) // m * m


def _chip_info():
    """Return (vmem_capacity_bytes, num_tensorcores) with safe fallbacks."""
    vmem_cap = 128 * 1024 * 1024
    try:
        info = pltpu.get_tpu_info()
        vmem_cap = int(getattr(info, "vmem_capacity_bytes", vmem_cap))
    except Exception:
        pass
    # Heuristic: 64 MiB-per-core parts (v7x) have 2 TensorCores per chip.
    num_tc = 2 if vmem_cap <= 64 * 1024 * 1024 else 1
    return vmem_cap, num_tc


def _tile_candidates(dim, prefs):
    cands = [t for t in prefs if t <= dim and dim % t == 0]
    if dim <= prefs[0]:
        cands.insert(0, dim)            # full-extent block is always legal
    if not cands:
        cands = [dim]
    seen, out = set(), []
    for t in cands:                     # dedupe, keep descending preference
        if t not in seen:
            seen.add(t)
            out.append(t)
    return out


def _footprint_bytes(tm, tk, tn, x_bytes, w_bytes, out_bytes, with_acc):
    # double-buffered x / W / out pipeline buffers (+ resident f32 accumulator)
    fp = (2 * tm * tk * x_bytes + 2 * tk * tn * w_bytes
          + 2 * tm * tn * out_bytes)
    if with_acc:
        fp += tm * tn * 4
    return fp


def _choose_tiles(tm, f, d, x_bytes, w_bytes, out_bytes, budget_bytes):
    tn_prefs = (4096, 2048, 1024, 512, 256, 128)
    tn_cands = _tile_candidates(d, tn_prefs)
    # First preference: keep the whole feature axis resident (full-K) -> the
    # weight-stationary grid path with no accumulator scratch.
    for tn in tn_cands:
        if _footprint_bytes(tm, f, tn, x_bytes, w_bytes, out_bytes, False) <= budget_bytes:
            return f, tn
    tk_cands = _tile_candidates(f, (4096, 2048, 1024, 512, 256, 128))
    for tn in tn_cands:
        for tk in tk_cands:
            if _footprint_bytes(tm, tk, tn, x_bytes, w_bytes, out_bytes, True) <= budget_bytes:
                return tk, tn
    return tk_cands[-1], tn_cands[-1]


# --------------------------------------------------------------------------- #
# Wrapper
# --------------------------------------------------------------------------- #
def encoder_forward(x, w_t, *, compute_dtype=jnp.bfloat16, out_dtype=jnp.bfloat16,
                    tn=None, tk=None, vmem_budget_bytes=None):
    """x: (B, ...) flattened to (B, F); w_t: (F, D) = Projection.weight.T.

    Returns (B, D) hypervectors in {-1, +1} (out_dtype).
    """
    b = x.shape[0]
    x2 = x.reshape(b, -1).astype(compute_dtype)       # nn.Flatten + cast (glue)
    f, d = w_t.shape
    assert x2.shape[1] == f, (x2.shape, w_t.shape)
    w_t = w_t.astype(compute_dtype)                   # halve HBM bytes for W stream

    vmem_cap, num_tc = _chip_info()
    if vmem_budget_bytes is None:
        # ~48 MiB on 128 MiB parts (v5e/v6e), ~24 MiB on 64 MiB parts (v7x).
        vmem_budget_bytes = int(0.375 * vmem_cap)

    # Pad batch to a full packed sublane group (16 rows for 2-byte operands);
    # tile M at 256 rows for large batches.
    sub = 16 if jnp.dtype(compute_dtype).itemsize == 2 else 8
    b_pad = _round_up(max(b, 1), sub)
    if b_pad > 256:
        b_pad = _round_up(b_pad, 256)
        tm = 256
    else:
        tm = b_pad
    if b_pad != b:
        x2 = jnp.pad(x2, ((0, b_pad - b), (0, 0)))

    x_bytes = jnp.dtype(compute_dtype).itemsize
    out_bytes = jnp.dtype(out_dtype).itemsize
    auto_tk, auto_tn = _choose_tiles(tm, f, d, x_bytes, x_bytes, out_bytes,
                                     vmem_budget_bytes)
    if tk is None:
        tk = auto_tk
    if tn is None:
        tn = auto_tn
        # On 2-TC parts, make sure there are >= 2 parallel blocks so both
        # TensorCores get work (halve tn while still lane-dense >= 128).
        while (num_tc > 1 and (b_pad // tm) * (d // tn) < num_tc
               and tn % 2 == 0 and tn // 2 >= 128):
            tn //= 2
    assert f % tk == 0 and d % tn == 0, (f, tk, d, tn)

    full_k = (tk == f)
    footprint = _footprint_bytes(tm, tk, tn, x_bytes, x_bytes, out_bytes,
                                 with_acc=not full_k)
    vmem_limit = min(max(32 * 1024 * 1024, int(1.3 * footprint)),
                     int(0.85 * vmem_cap))

    if full_k:
        # Weight-stationary grid: N outer, M inner -> consecutive inner steps
        # keep the same W block index, so Pallas skips the W re-DMA and the
        # dominant (F x D) stream is read exactly once regardless of batch.
        grid = (d // tn, b_pad // tm)
        kernel = _encoder_kernel_fullk
        in_specs = [
            pl.BlockSpec((tm, f), lambda j, i: (i, 0)),    # x tile (inner M)
            pl.BlockSpec((f, tn), lambda j, i: (0, j)),    # W tile (outer N only)
        ]
        out_specs = pl.BlockSpec((tm, tn), lambda j, i: (i, j))
        scratch_shapes = []
        dims = ("parallel", "parallel")
    else:
        grid = (b_pad // tm, d // tn, f // tk)
        kernel = _encoder_kernel_ksplit
        in_specs = [
            pl.BlockSpec((tm, tk), lambda i, j, k: (i, k)),  # x tile
            pl.BlockSpec((tk, tn), lambda i, j, k: (k, j)),  # W_t tile
        ]
        out_specs = pl.BlockSpec((tm, tn), lambda i, j, k: (i, j))
        scratch_shapes = [pltpu.VMEM((tm, tn), jnp.float32)]
        dims = ("parallel", "parallel", "arbitrary")

    out = pl.pallas_call(
        kernel,
        out_shape=jax.ShapeDtypeStruct((b_pad, d), out_dtype),
        grid_spec=pltpu.PrefetchScalarGridSpec(
            num_scalar_prefetch=0,
            grid=grid,
            in_specs=in_specs,
            out_specs=out_specs,
            scratch_shapes=scratch_shapes,
        ),
        compiler_params=pltpu.CompilerParams(
            dimension_semantics=dims,
            vmem_limit_bytes=vmem_limit,
        ),
    )(x2, w_t)
    return out[:b]


def make_projection_weight(key, size, hd_dim):
    """torchhd.embeddings.Projection init: W ~ N(0,1), rows L2-normalized."""
    w = jax.random.normal(key, (hd_dim, size), dtype=jnp.float32)
    w = w / jnp.linalg.norm(w, axis=-1, keepdims=True)
    return w  # (hd_dim, size) — PyTorch Linear layout


if __name__ == "__main__":
    key = jax.random.PRNGKey(0)
    k_x, k_w = jax.random.split(key)

    # Small synthetic shapes: image-like NCHW input, flattened by the encoder.
    B, C, H, W = 2, 4, 16, 16
    size = C * H * W          # 1024 input features after Flatten
    hd_dim = 256              # hypervector dimensionality

    x = jax.random.normal(k_x, (B, C, H, W), dtype=jnp.float32)
    w = make_projection_weight(k_w, size, hd_dim)     # (hd_dim, size)
    w_t = w.T                                         # (size, hd_dim) for kernel

    # Default config: full-K weight-stationary path, bf16 outputs.
    out = jax.block_until_ready(encoder_forward(x, w_t))
    # Forced-small-tile config: exercises the K-split reduction + N tiling.
    out_tiled = jax.block_until_ready(encoder_forward(x, w_t, tn=128, tk=512))
    # f32-output variant (torchhd's native output dtype).
    out_f32 = jax.block_until_ready(
        encoder_forward(x, w_t, out_dtype=jnp.float32))

    # f32 reference (torchhd semantics).  bf16 weights may flip the sign of
    # accumulations that are essentially zero, so only require agreement where
    # the f32 projection is clearly away from zero.
    acc_ref = x.reshape(B, -1) @ w.T
    ref = jnp.where(acc_ref > 0.0, 1.0, -1.0)
    near_zero = jnp.abs(acc_ref) < 5e-2

    for o in (out, out_tiled, out_f32):
        o32 = o.astype(jnp.float32)
        assert o.shape == (B, hd_dim)
        assert bool(jnp.all(jnp.abs(o32) == 1.0))           # strictly {-1, +1}
        assert bool(jnp.all((o32 == ref) | near_zero))

    print("KERNEL_OK")
</pallas_src>

<mosaic_0001>
module attributes {stable_mosaic.version = 11 : i64} {
  func.func @_encoder_kernel_fullk(%arg0: i32, %arg1: i32, %arg2: memref<16x1024xbf16, #tpu.memory_space<vmem>>, %arg3: memref<1024x256xbf16, #tpu.memory_space<vmem>>, %arg4: memref<16x256xbf16, #tpu.memory_space<vmem>>) attributes {dimension_semantics = [#tpu.dimension_semantics<parallel>, #tpu.dimension_semantics<parallel>], iteration_bounds = array<i64: 1, 1>, scalar_prefetch = 0 : i64, scratch_operands = 0 : i64, tpu.core_type = #tpu.core_type<tc>, window_params = [{transform_indices = @transform_0, window_bounds = array<i64: 16, 1024>}, {transform_indices = @transform_1, window_bounds = array<i64: 1024, 256>}, {transform_indices = @transform_2, window_bounds = array<i64: 16, 256>}]} {
    %c0 = arith.constant 0 : index
    %c0_0 = arith.constant 0 : index
    %0 = vector.load %arg2[%c0, %c0_0] : memref<16x1024xbf16, #tpu.memory_space<vmem>>, vector<16x1024xbf16>
    %c0_1 = arith.constant 0 : index
    %c0_2 = arith.constant 0 : index
    %1 = vector.load %arg3[%c0_1, %c0_2] : memref<1024x256xbf16, #tpu.memory_space<vmem>>, vector<1024x256xbf16>
    %cst = arith.constant dense<0.000000e+00> : vector<16x256xf32>
    %2 = tpu.matmul %0, %1, %cst {dimension_numbers = #tpu.dot_dimension_numbers<[1], [0], [0], [1], [0, 0, 1, 1], [], []>} : vector<16x1024xbf16>, vector<1024x256xbf16>, vector<16x256xf32> -> vector<16x256xf32>
    %cst_3 = arith.constant 0.000000e+00 : f32
    %3 = vector.broadcast %cst_3 : f32 to vector<16x256xf32>
    %4 = arith.cmpf ogt, %2, %3 : vector<16x256xf32>
    %cst_4 = arith.constant 1.000000e+00 : f32
    %cst_5 = arith.constant -1.000000e+00 : f32
    %5 = vector.broadcast %cst_4 : f32 to vector<16x256xf32>
    %6 = vector.broadcast %cst_5 : f32 to vector<16x256xf32>
    %7 = arith.select %4, %5, %6 : vector<16x256xi1>, vector<16x256xf32>
    %8 = arith.truncf %7 : vector<16x256xf32> to vector<16x256xbf16>
    %c0_6 = arith.constant 0 : index
    %c0_7 = arith.constant 0 : index
    %9 = vector.load %arg4[%c0_6, %c0_7] : memref<16x256xbf16, #tpu.memory_space<vmem>>, vector<16x256xbf16>
    tpu.vector_store %arg4[%c0_6, %c0_7], %8 {strides = array<i32>} : memref<16x256xbf16, #tpu.memory_space<vmem>>, vector<16x256xbf16>,
    return
  }
  func.func @transform_0(%arg0: i32, %arg1: i32) -> (i32, i32) {
    %c0_i32 = arith.constant 0 : i32
    %c0_i32_0 = arith.constant 0 : i32
    return %arg1, %c0_i32 : i32, i32
  }
  func.func @transform_1(%arg0: i32, %arg1: i32) -> (i32, i32) {
    %c0_i32 = arith.constant 0 : i32
    %c0_i32_0 = arith.constant 0 : i32
    return %c0_i32, %arg0 : i32, i32
  }
  func.func @transform_2(%arg0: i32, %arg1: i32) -> (i32, i32) {
    %c0_i32 = arith.constant 0 : i32
    return %arg1, %arg0 : i32, i32
  }
}

</mosaic_0001>

<llo_original>
// kernel: tpu_custom_call.1
$region0: #{tpu_custom_call.1}
  #allocation0 [shape = 'u32[]', space=smem, size = 0x4, offset = 0x4, fixed_abs, tag = 'smem constant byte address 0x4 - core index']
  #allocation1 [shape = 'u32[72,128]{1,0:T(1,128)}', space=vmem, size = 0x9000, scoped, tag = 'internal scratch']
  %s0 = inlined_call_operand.hbm [shape: bf16[16,1024], index: 0, kind: input, shape index: {}]
  %s1 = inlined_call_operand.hbm [shape: bf16[1024,256], index: 1, kind: input, shape index: {}]
  %s2 = inlined_call_operand.hbm [shape: bf16[16,256], index: 2, kind: output, shape index: {}]
  %s3 = sld [smem:[#allocation0]]
  $region26: #{tpu_custom_call.1} parent=0
    _
  %s5 = ssub.s32 1, %s3
  %s6 = scalar_select 0, %s5, %s3
  $region1: #{tpu_custom_call.1} parent=0
    #allocation2 [shape = 'u8[32768]{0}', space=vmem, size = 0x8000, scoped, tag = 'input window, operand 0, single buffered']
    #allocation3 [shape = 's32[1]{0}', space=sflag, size = 0x4, scoped, tag = 'scoped memory for tpu_custom_call.1']
    #allocation4 [shape = 's32[1]{0}', space=sflag, size = 0x4, scoped, tag = 'scoped memory for tpu_custom_call.1']
    #allocation5 [shape = 'u8[524288]{0}', space=vmem, size = 0x80000, scoped, tag = 'input window, operand 1, single buffered']
    #allocation6 [shape = 's32[1]{0}', space=sflag, size = 0x4, scoped, tag = 'scoped memory for tpu_custom_call.1']
    #allocation7 [shape = 'u8[8192]{0}', space=vmem, size = 0x2000, scoped, tag = 'output window, operand 0, single buffered']
    %7 = vsyncpa [#allocation3], 0
    %8 = vsyncpa [#allocation6], 0
    %9 = vsyncpa [#allocation4], 0
    // Predicated region
    $region2: #{tpu_custom_call.1} parent=1 // pred_check
      _
    $region3: #{tpu_custom_call.1} parent=1 // pred_check_branch
      %11 = sbr.rel (0) target = $region5
    $region4: #{tpu_custom_call.1} parent=1 // pred_region
      %13 = vsyncadd [#allocation3], 0
      %s14 = sshll.u32 %s0, 4
      %s15 = int_to_ptr.hbm [resolvable:$true] %s14
      %s16 = sshll.u32 [#allocation2], 4
      %s17 = int_to_ptr.vmem [resolvable:$true] %s16
      %22 = dma.hbm_to_vmem [thread:$0]  %s15, 1024, %s17, [#allocation3], 512, 512, 32
    $region5: #{tpu_custom_call.1} parent=1 // pred_fallthru
      _
    // Predicated region
    $region6: #{tpu_custom_call.1} parent=1 // pred_check
      _
    $region7: #{tpu_custom_call.1} parent=1 // pred_check_branch
      %24 = sbr.rel (0) target = $region9
    $region8: #{tpu_custom_call.1} parent=1 // pred_region
      %26 = vsyncadd [#allocation6], 0
      %s27 = sshll.u32 %s1, 4
      %s28 = int_to_ptr.hbm [resolvable:$true] %s27
      %s29 = sshll.u32 [#allocation5], 4
      %s30 = int_to_ptr.vmem [resolvable:$true] %s29
      %35 = dma.hbm_to_vmem [thread:$0]  %s28, 16384, %s30, [#allocation6], 128, 128, 8
    $region9: #{tpu_custom_call.1} parent=1 // pred_fallthru
      _
    // Predicated region
    $region10: #{tpu_custom_call.1} parent=1 // pred_check
      _
    $region11: #{tpu_custom_call.1} parent=1 // pred_check_branch
      %37 = sbr.rel (0) target = $region13
    $region12: #{tpu_custom_call.1} parent=1 // pred_region
      %39 = dma.done [#allocation3], 1024
    $region13: #{tpu_custom_call.1} parent=1 // pred_fallthru
      _
    // Predicated region
    $region14: #{tpu_custom_call.1} parent=1 // pred_check
      _
    $region15: #{tpu_custom_call.1} parent=1 // pred_check_branch
      %41 = sbr.rel (0) target = $region17
    $region16: #{tpu_custom_call.1} parent=1 // pred_region
      %43 = dma.done [#allocation6], 16384
    $region17: #{tpu_custom_call.1} parent=1 // pred_fallthru
      _
    %v44 = vld [vmem:[#allocation2] sm:$0xff]
    %v45 = vld [vmem:[#allocation2 + $0x8] sm:$0xff]
    %v46 = vld [vmem:[#allocation2 + $0x10] sm:$0xff]
    %v47 = vld [vmem:[#allocation2 + $0x18] sm:$0xff]
    %v48 = vld [vmem:[#allocation2 + $0x20] sm:$0xff]
    %v49 = vld [vmem:[#allocation2 + $0x28] sm:$0xff]
    %v50 = vld [vmem:[#allocation2 + $0x30] sm:$0xff]
    %v51 = vld [vmem:[#allocation2 + $0x38] sm:$0xff]
    %v52 = vld [vmem:[#allocation5] sm:$0xff]
    %v53 = vld [vmem:[#allocation5 + $0x8] sm:$0xff]
    %v54 = vld [vmem:[#allocation5 + $0x10] sm:$0xff]
    %v55 = vld [vmem:[#allocation5 + $0x18] sm:$0xff]
    %v56 = vld [vmem:[#allocation5 + $0x20] sm:$0xff]
    %v57 = vld [vmem:[#allocation5 + $0x28] sm:$0xff]
    %v58 = vld [vmem:[#allocation5 + $0x30] sm:$0xff]
    %v59 = vld [vmem:[#allocation5 + $0x38] sm:$0xff]
    %v60 = vld [vmem:[#allocation5 + $0x40] sm:$0xff]
    %v61 = vld [vmem:[#allocation5 + $0x48] sm:$0xff]
    %v62 = vld [vmem:[#allocation5 + $0x50] sm:$0xff]
    %v63 = vld [vmem:[#allocation5 + $0x58] sm:$0xff]
    %v64 = vld [vmem:[#allocation5 + $0x60] sm:$0xff]
    %v65 = vld [vmem:[#allocation5 + $0x68] sm:$0xff]
    %v66 = vld [vmem:[#allocation5 + $0x70] sm:$0xff]
    %v67 = vld [vmem:[#allocation5 + $0x78] sm:$0xff]
    %v68 = vld [vmem:[#allocation5 + $0x80] sm:$0xff]
    %v69 = vld [vmem:[#allocation5 + $0x88] sm:$0xff]
    %v70 = vld [vmem:[#allocation5 + $0x90] sm:$0xff]
    %v71 = vld [vmem:[#allocation5 + $0x98] sm:$0xff]
    %v72 = vld [vmem:[#allocation5 + $0xa0] sm:$0xff]
    %v73 = vld [vmem:[#allocation5 + $0xa8] sm:$0xff]
    %v74 = vld [vmem:[#allocation5 + $0xb0] sm:$0xff]
    %v75 = vld [vmem:[#allocation5 + $0xb8] sm:$0xff]
    %v76 = vld [vmem:[#allocation5 + $0xc0] sm:$0xff]
    %v77 = vld [vmem:[#allocation5 + $0xc8] sm:$0xff]
    %v78 = vld [vmem:[#allocation5 + $0xd0] sm:$0xff]
    %v79 = vld [vmem:[#allocation5 + $0xd8] sm:$0xff]
    %v80 = vld [vmem:[#allocation5 + $0xe0] sm:$0xff]
    %v81 = vld [vmem:[#allocation5 + $0xe8] sm:$0xff]
    %v82 = vld [vmem:[#allocation5 + $0xf0] sm:$0xff]
    %v83 = vld [vmem:[#allocation5 + $0xf8] sm:$0xff]
    %v84 = vld [vmem:[#allocation5 + $0x100] sm:$0xff]
    %v85 = vld [vmem:[#allocation5 + $0x108] sm:$0xff]
    %v86 = vld [vmem:[#allocation5 + $0x110] sm:$0xff]
    %v87 = vld [vmem:[#allocation5 + $0x118] sm:$0xff]
    %v88 = vld [vmem:[#allocation5 + $0x120] sm:$0xff]
    %v89 = vld [vmem:[#allocation5 + $0x128] sm:$0xff]
    %v90 = vld [vmem:[#allocation5 + $0x130] sm:$0xff]
    %v91 = vld [vmem:[#allocation5 + $0x138] sm:$0xff]
    %v92 = vld [vmem:[#allocation5 + $0x140] sm:$0xff]
    %v93 = vld [vmem:[#allocation5 + $0x148] sm:$0xff]
    %v94 = vld [vmem:[#allocation5 + $0x150] sm:$0xff]
    %v95 = vld [vmem:[#allocation5 + $0x158] sm:$0xff]
    %v96 = vld [vmem:[#allocation5 + $0x160] sm:$0xff]
    %v97 = vld [vmem:[#allocation5 + $0x168] sm:$0xff]
    %v98 = vld [vmem:[#allocation5 + $0x170] sm:$0xff]
    %v99 = vld [vmem:[#allocation5 + $0x178] sm:$0xff]
    %v100 = vld [vmem:[#allocation5 + $0x180] sm:$0xff]
    %v101 = vld [vmem:[#allocation5 + $0x188] sm:$0xff]
    %v102 = vld [vmem:[#allocation5 + $0x190] sm:$0xff]
    %v103 = vld [vmem:[#allocation5 + $0x198] sm:$0xff]
    %v104 = vld [vmem:[#allocation5 + $0x1a0] sm:$0xff]
    %v105 = vld [vmem:[#allocation5 + $0x1a8] sm:$0xff]
    %v106 = vld [vmem:[#allocation5 + $0x1b0] sm:$0xff]
    %v107 = vld [vmem:[#allocation5 + $0x1b8] sm:$0xff]
    %v108 = vld [vmem:[#allocation5 + $0x1c0] sm:$0xff]
    %v109 = vld [vmem:[#allocation5 + $0x1c8] sm:$0xff]
    %v110 = vld [vmem:[#allocation5 + $0x1d0] sm:$0xff]
    %v111 = vld [vmem:[#allocation5 + $0x1d8] sm:$0xff]
    %v112 = vld [vmem:[#allocation5 + $0x1e0] sm:$0xff]
    %v113 = vld [vmem:[#allocation5 + $0x1e8] sm:$0xff]
    %v114 = vld [vmem:[#allocation5 + $0x1f0] sm:$0xff]
    %v115 = vld [vmem:[#allocation5 + $0x1f8] sm:$0xff]
    %v116 = vld [vmem:[#allocation5 + $0x200] sm:$0xff]
    %v117 = vld [vmem:[#allocation5 + $0x208] sm:$0xff]
    %v118 = vld [vmem:[#allocation5 + $0x210] sm:$0xff]
    %v119 = vld [vmem:[#allocation5 + $0x218] sm:$0xff]
    %v120 = vld [vmem:[#allocation5 + $0x220] sm:$0xff]
    %v121 = vld [vmem:[#allocation5 + $0x228] sm:$0xff]
    %v122 = vld [vmem:[#allocation5 + $0x230] sm:$0xff]
    %v123 = vld [vmem:[#allocation5 + $0x238] sm:$0xff]
    %v124 = vld [vmem:[#allocation5 + $0x240] sm:$0xff]
    %v125 = vld [vmem:[#allocation5 + $0x248] sm:$0xff]
    %v126 = vld [vmem:[#allocation5 + $0x250] sm:$0xff]
    %v127 = vld [vmem:[#allocation5 + $0x258] sm:$0xff]
    %v128 = vld [vmem:[#allocation5 + $0x260] sm:$0xff]
    %v129 = vld [vmem:[#allocation5 + $0x268] sm:$0xff]
    %v130 = vld [vmem:[#allocation5 + $0x270] sm:$0xff]
    %v131 = vld [vmem:[#allocation5 + $0x278] sm:$0xff]
    %v132 = vld [vmem:[#allocation5 + $0x280] sm:$0xff]
    %v133 = vld [vmem:[#allocation5 + $0x288] sm:$0xff]
    %v134 = vld [vmem:[#allocation5 + $0x290] sm:$0xff]
    %v135 = vld [vmem:[#allocation5 + $0x298] sm:$0xff]
    %v136 = vld [vmem:[#allocation5 + $0x2a0] sm:$0xff]
    %v137 = vld [vmem:[#allocation5 + $0x2a8] sm:$0xff]
    %v138 = vld [vmem:[#allocation5 + $0x2b0] sm:$0xff]
    %v139 = vld [vmem:[#allocation5 + $0x2b8] sm:$0xff]
    %v140 = vld [vmem:[#allocation5 + $0x2c0] sm:$0xff]
    %v141 = vld [vmem:[#allocation5 + $0x2c8] sm:$0xff]
    %v142 = vld [vmem:[#allocation5 + $0x2d0] sm:$0xff]
    %v143 = vld [vmem:[#allocation5 + $0x2d8] sm:$0xff]
    %v144 = vld [vmem:[#allocation5 + $0x2e0] sm:$0xff]
    %v145 = vld [vmem:[#allocation5 + $0x2e8] sm:$0xff]
    %v146 = vld [vmem:[#allocation5 + $0x2f0] sm:$0xff]
    %v147 = vld [vmem:[#allocation5 + $0x2f8] sm:$0xff]
    %v148 = vld [vmem:[#allocation5 + $0x300] sm:$0xff]
    %v149 = vld [vmem:[#allocation5 + $0x308] sm:$0xff]
    %v150 = vld [vmem:[#allocation5 + $0x310] sm:$0xff]
    %v151 = vld [vmem:[#allocation5 + $0x318] sm:$0xff]
    %v152 = vld [vmem:[#allocation5 + $0x320] sm:$0xff]
    %v153 = vld [vmem:[#allocation5 + $0x328] sm:$0xff]
    %v154 = vld [vmem:[#allocation5 + $0x330] sm:$0xff]
    %v155 = vld [vmem:[#allocation5 + $0x338] sm:$0xff]
    %v156 = vld [vmem:[#allocation5 + $0x340] sm:$0xff]
    %v157 = vld [vmem:[#allocation5 + $0x348] sm:$0xff]
    %v158 = vld [vmem:[#allocation5 + $0x350] sm:$0xff]
    %v159 = vld [vmem:[#allocation5 + $0x358] sm:$0xff]
    %v160 = vld [vmem:[#allocation5 + $0x360] sm:$0xff]
    %v161 = vld [vmem:[#allocation5 + $0x368] sm:$0xff]
    %v162 = vld [vmem:[#allocation5 + $0x370] sm:$0xff]
    %v163 = vld [vmem:[#allocation5 + $0x378] sm:$0xff]
    %v164 = vld [vmem:[#allocation5 + $0x380] sm:$0xff]
    %v165 = vld [vmem:[#allocation5 + $0x388] sm:$0xff]
    %v166 = vld [vmem:[#allocation5 + $0x390] sm:$0xff]
    %v167 = vld [vmem:[#allocation5 + $0x398] sm:$0xff]
    %v168 = vld [vmem:[#allocation5 + $0x3a0] sm:$0xff]
    %v169 = vld [vmem:[#allocation5 + $0x3a8] sm:$0xff]
    %v170 = vld [vmem:[#allocation5 + $0x3b0] sm:$0xff]
    %v171 = vld [vmem:[#allocation5 + $0x3b8] sm:$0xff]
    %v172 = vld [vmem:[#allocation5 + $0x3c0] sm:$0xff]
    %v173 = vld [vmem:[#allocation5 + $0x3c8] sm:$0xff]
    %v174 = vld [vmem:[#allocation5 + $0x3d0] sm:$0xff]
    %v175 = vld [vmem:[#allocation5 + $0x3d8] sm:$0xff]
    %v176 = vld [vmem:[#allocation5 + $0x3e0] sm:$0xff]
    %v177 = vld [vmem:[#allocation5 + $0x3e8] sm:$0xff]
    %v178 = vld [vmem:[#allocation5 + $0x3f0] sm:$0xff]
    %v179 = vld [vmem:[#allocation5 + $0x3f8] sm:$0xff]
    %v188 = vunpack.c.l.b16 %v44
    %v189 = vunpack.c.h.b16 %v44
    %v190 = vunpack.c.l.b16 %v45
    %v191 = vunpack.c.h.b16 %v45
    %v192 = vunpack.c.l.b16 %v46
    %v193 = vunpack.c.h.b16 %v46
    %v194 = vunpack.c.l.b16 %v47
    %v195 = vunpack.c.h.b16 %v47
    %v196 = vunpack.c.l.b16 %v48
    %v197 = vunpack.c.h.b16 %v48
    %v198 = vunpack.c.l.b16 %v49
    %v199 = vunpack.c.h.b16 %v49
    %v200 = vunpack.c.l.b16 %v50
    %v201 = vunpack.c.h.b16 %v50
    %v202 = vunpack.c.l.b16 %v51
    %v203 = vunpack.c.h.b16 %v51
    %v204 = vpack.c.b16 %v196, %v188
    %v205 = vpack.c.b16 %v197, %v189
    %v206 = vpack.c.b16 %v198, %v190
    %v207 = vpack.c.b16 %v199, %v191
    %v208 = vpack.c.b16 %v200, %v192
    %v209 = vpack.c.b16 %v201, %v193
    %v210 = vpack.c.b16 %v202, %v194
    %v211 = vpack.c.b16 %v203, %v195
    %v348 = vunpack.c.l.b16 %v52
    %v349 = vunpack.c.h.b16 %v52
    %v350 = vunpack.c.l.b16 %v53
    %v351 = vunpack.c.h.b16 %v53
    %v352 = vunpack.c.l.b16 %v54
    %v353 = vunpack.c.h.b16 %v54
    %v354 = vunpack.c.l.b16 %v55
    %v355 = vunpack.c.h.b16 %v55
    %v356 = vunpack.c.l.b16 %v56
    %v357 = vunpack.c.h.b16 %v56
    %v358 = vunpack.c.l.b16 %v57
    %v359 = vunpack.c.h.b16 %v57
    %v360 = vunpack.c.l.b16 %v58
    %v361 = vunpack.c.h.b16 %v58
    %v362 = vunpack.c.l.b16 %v59
    %v363 = vunpack.c.h.b16 %v59
    %v364 = vunpack.c.l.b16 %v60
    %v365 = vunpack.c.h.b16 %v60
    %v366 = vunpack.c.l.b16 %v61
    %v367 = vunpack.c.h.b16 %v61
    %v368 = vunpack.c.l.b16 %v62
    %v369 = vunpack.c.h.b16 %v62
    %v370 = vunpack.c.l.b16 %v63
    %v371 = vunpack.c.h.b16 %v63
    %v372 = vunpack.c.l.b16 %v64
    %v373 = vunpack.c.h.b16 %v64
    %v374 = vunpack.c.l.b16 %v65
    %v375 = vunpack.c.h.b16 %v65
    %v376 = vunpack.c.l.b16 %v66
    %v377 = vunpack.c.h.b16 %v66
    %v378 = vunpack.c.l.b16 %v67
    %v379 = vunpack.c.h.b16 %v67
    %v380 = vunpack.c.l.b16 %v68
    %v381 = vunpack.c.h.b16 %v68
    %v382 = vunpack.c.l.b16 %v69
    %v383 = vunpack.c.h.b16 %v69
    %v384 = vunpack.c.l.b16 %v70
    %v385 = vunpack.c.h.b16 %v70
    %v386 = vunpack.c.l.b16 %v71
    %v387 = vunpack.c.h.b16 %v71
    %v388 = vunpack.c.l.b16 %v72
    %v389 = vunpack.c.h.b16 %v72
    %v390 = vunpack.c.l.b16 %v73
    %v391 = vunpack.c.h.b16 %v73
    %v392 = vunpack.c.l.b16 %v74
    %v393 = vunpack.c.h.b16 %v74
    %v394 = vunpack.c.l.b16 %v75
    %v395 = vunpack.c.h.b16 %v75
    %v396 = vunpack.c.l.b16 %v76
    %v397 = vunpack.c.h.b16 %v76
    %v398 = vunpack.c.l.b16 %v77
    %v399 = vunpack.c.h.b16 %v77
    %v400 = vunpack.c.l.b16 %v78
    %v401 = vunpack.c.h.b16 %v78
    %v402 = vunpack.c.l.b16 %v79
    %v403 = vunpack.c.h.b16 %v79
    %v404 = vunpack.c.l.b16 %v80
    %v405 = vunpack.c.h.b16 %v80
    %v406 = vunpack.c.l.b16 %v81
    %v407 = vunpack.c.h.b16 %v81
    %v408 = vunpack.c.l.b16 %v82
    %v409 = vunpack.c.h.b16 %v82
    %v410 = vunpack.c.l.b16 %v83
    %v411 = vunpack.c.h.b16 %v83
    %v412 = vunpack.c.l.b16 %v84
    %v413 = vunpack.c.h.b16 %v84
    %v414 = vunpack.c.l.b16 %v85
    %v415 = vunpack.c.h.b16 %v85
    %v416 = vunpack.c.l.b16 %v86
    %v417 = vunpack.c.h.b16 %v86
    %v418 = vunpack.c.l.b16 %v87
    %v419 = vunpack.c.h.b16 %v87
    %v420 = vunpack.c.l.b16 %v88
    %v421 = vunpack.c.h.b16 %v88
    %v422 = vunpack.c.l.b16 %v89
    %v423 = vunpack.c.h.b16 %v89
    %v424 = vunpack.c.l.b16 %v90
    %v425 = vunpack.c.h.b16 %v90
    %v426 = vunpack.c.l.b16 %v91
    %v427 = vunpack.c.h.b16 %v91
    %v428 = vunpack.c.l.b16 %v92
    %v429 = vunpack.c.h.b16 %v92
    %v430 = vunpack.c.l.b16 %v93
    %v431 = vunpack.c.h.b16 %v93
    %v432 = vunpack.c.l.b16 %v94
    %v433 = vunpack.c.h.b16 %v94
    %v434 = vunpack.c.l.b16 %v95
    %v435 = vunpack.c.h.b16 %v95
    %v436 = vunpack.c.l.b16 %v96
    %v437 = vunpack.c.h.b16 %v96
    %v438 = vunpack.c.l.b16 %v97
    %v439 = vunpack.c.h.b16 %v97
    %v440 = vunpack.c.l.b16 %v98
    %v441 = vunpack.c.h.b16 %v98
    %v442 = vunpack.c.l.b16 %v99
    %v443 = vunpack.c.h.b16 %v99
    %v444 = vunpack.c.l.b16 %v100
    %v445 = vunpack.c.h.b16 %v100
    %v446 = vunpack.c.l.b16 %v101
    %v447 = vunpack.c.h.b16 %v101
    %v448 = vunpack.c.l.b16 %v102
    %v449 = vunpack.c.h.b16 %v102
    %v450 = vunpack.c.l.b16 %v103
    %v451 = vunpack.c.h.b16 %v103
    %v452 = vunpack.c.l.b16 %v104
    %v453 = vunpack.c.h.b16 %v104
    %v454 = vunpack.c.l.b16 %v105
    %v455 = vunpack.c.h.b16 %v105
    %v456 = vunpack.c.l.b16 %v106
    %v457 = vunpack.c.h.b16 %v106
    %v458 = vunpack.c.l.b16 %v107
    %v459 = vunpack.c.h.b16 %v107
    %v460 = vunpack.c.l.b16 %v108
    %v461 = vunpack.c.h.b16 %v108
    %v462 = vunpack.c.l.b16 %v109
    %v463 = vunpack.c.h.b16 %v109
    %v464 = vunpack.c.l.b16 %v110
    %v465 = vunpack.c.h.b16 %v110
    %v466 = vunpack.c.l.b16 %v111
    %v467 = vunpack.c.h.b16 %v111
    %v468 = vunpack.c.l.b16 %v112
    %v469 = vunpack.c.h.b16 %v112
    %v470 = vunpack.c.l.b16 %v113
    %v471 = vunpack.c.h.b16 %v113
    %v472 = vunpack.c.l.b16 %v114
    %v473 = vunpack.c.h.b16 %v114
    %v474 = vunpack.c.l.b16 %v115
    %v475 = vunpack.c.h.b16 %v115
    %v476 = vunpack.c.l.b16 %v116
    %v477 = vunpack.c.h.b16 %v116
    %v478 = vunpack.c.l.b16 %v117
    %v479 = vunpack.c.h.b16 %v117
    %v480 = vunpack.c.l.b16 %v118
    %v481 = vunpack.c.h.b16 %v118
    %v482 = vunpack.c.l.b16 %v119
    %v483 = vunpack.c.h.b16 %v119
    %v484 = vunpack.c.l.b16 %v120
    %v485 = vunpack.c.h.b16 %v120
    %v486 = vunpack.c.l.b16 %v121
    %v487 = vunpack.c.h.b16 %v121
    %v488 = vunpack.c.l.b16 %v122
    %v489 = vunpack.c.h.b16 %v122
    %v490 = vunpack.c.l.b16 %v123
    %v491 = vunpack.c.h.b16 %v123
    %v492 = vunpack.c.l.b16 %v124
    %v493 = vunpack.c.h.b16 %v124
    %v494 = vunpack.c.l.b16 %v125
    %v495 = vunpack.c.h.b16 %v125
    %v496 = vunpack.c.l.b16 %v126
    %v497 = vunpack.c.h.b16 %v126
    %v498 = vunpack.c.l.b16 %v127
    %v499 = vunpack.c.h.b16 %v127
    %v500 = vunpack.c.l.b16 %v128
    %v501 = vunpack.c.h.b16 %v128
    %v502 = vunpack.c.l.b16 %v129
    %v503 = vunpack.c.h.b16 %v129
    %v504 = vunpack.c.l.b16 %v130
    %v505 = vunpack.c.h.b16 %v130
    %v506 = vunpack.c.l.b16 %v131
    %v507 = vunpack.c.h.b16 %v131
    %v508 = vunpack.c.l.b16 %v132
    %v509 = vunpack.c.h.b16 %v132
    %v510 = vunpack.c.l.b16 %v133
    %v511 = vunpack.c.h.b16 %v133
    %v512 = vunpack.c.l.b16 %v134
    %v513 = vunpack.c.h.b16 %v134
    %v514 = vunpack.c.l.b16 %v135
    %v515 = vunpack.c.h.b16 %v135
    %v516 = vunpack.c.l.b16 %v136
    %v517 = vunpack.c.h.b16 %v136
    %v518 = vunpack.c.l.b16 %v137
    %v519 = vunpack.c.h.b16 %v137
    %v520 = vunpack.c.l.b16 %v138
    %v521 = vunpack.c.h.b16 %v138
    %v522 = vunpack.c.l.b16 %v139
    %v523 = vunpack.c.h.b16 %v139
    %v524 = vunpack.c.l.b16 %v140
    %v525 = vunpack.c.h.b16 %v140
    %v526 = vunpack.c.l.b16 %v141
    %v527 = vunpack.c.h.b16 %v141
    %v528 = vunpack.c.l.b16 %v142
    %v529 = vunpack.c.h.b16 %v142
    %v530 = vunpack.c.l.b16 %v143
    %v531 = vunpack.c.h.b16 %v143
    %v532 = vunpack.c.l.b16 %v144
    %v533 = vunpack.c.h.b16 %v144
    %v534 = vunpack.c.l.b16 %v145
    %v535 = vunpack.c.h.b16 %v145
    %v536 = vunpack.c.l.b16 %v146
    %v537 = vunpack.c.h.b16 %v146
    %v538 = vunpack.c.l.b16 %v147
    %v539 = vunpack.c.h.b16 %v147
    %v540 = vunpack.c.l.b16 %v148
    %v541 = vunpack.c.h.b16 %v148
    %v542 = vunpack.c.l.b16 %v149
    %v543 = vunpack.c.h.b16 %v149
    %v544 = vunpack.c.l.b16 %v150
    %v545 = vunpack.c.h.b16 %v150
    %v546 = vunpack.c.l.b16 %v151
    %v547 = vunpack.c.h.b16 %v151
    %v548 = vunpack.c.l.b16 %v152
    %v549 = vunpack.c.h.b16 %v152
    %v550 = vunpack.c.l.b16 %v153
    %v551 = vunpack.c.h.b16 %v153
    %v552 = vunpack.c.l.b16 %v154
    %v553 = vunpack.c.h.b16 %v154
    %v554 = vunpack.c.l.b16 %v155
    %v555 = vunpack.c.h.b16 %v155
    %v556 = vunpack.c.l.b16 %v156
    %v557 = vunpack.c.h.b16 %v156
    %v558 = vunpack.c.l.b16 %v157
    %v559 = vunpack.c.h.b16 %v157
    %v560 = vunpack.c.l.b16 %v158
    %v561 = vunpack.c.h.b16 %v158
    %v562 = vunpack.c.l.b16 %v159
    %v563 = vunpack.c.h.b16 %v159
    %v564 = vunpack.c.l.b16 %v160
    %v565 = vunpack.c.h.b16 %v160
    %v566 = vunpack.c.l.b16 %v161
    %v567 = vunpack.c.h.b16 %v161
    %v568 = vunpack.c.l.b16 %v162
    %v569 = vunpack.c.h.b16 %v162
    %v570 = vunpack.c.l.b16 %v163
    %v571 = vunpack.c.h.b16 %v163
    %v572 = vunpack.c.l.b16 %v164
    %v573 = vunpack.c.h.b16 %v164
    %v574 = vunpack.c.l.b16 %v165
    %v575 = vunpack.c.h.b16 %v165
    %v576 = vunpack.c.l.b16 %v166
    %v577 = vunpack.c.h.b16 %v166
    %v578 = vunpack.c.l.b16 %v167
    %v579 = vunpack.c.h.b16 %v167
    %v580 = vunpack.c.l.b16 %v168
    %v581 = vunpack.c.h.b16 %v168
    %v582 = vunpack.c.l.b16 %v169
    %v583 = vunpack.c.h.b16 %v169
    %v584 = vunpack.c.l.b16 %v170
    %v585 = vunpack.c.h.b16 %v170
    %v586 = vunpack.c.l.b16 %v171
    %v587 = vunpack.c.h.b16 %v171
    %v588 = vunpack.c.l.b16 %v172
    %v589 = vunpack.c.h.b16 %v172
    %v590 = vunpack.c.l.b16 %v173
    %v591 = vunpack.c.h.b16 %v173
    %v592 = vunpack.c.l.b16 %v174
    %v593 = vunpack.c.h.b16 %v174
    %v594 = vunpack.c.l.b16 %v175
    %v595 = vunpack.c.h.b16 %v175
    %v596 = vunpack.c.l.b16 %v176
    %v597 = vunpack.c.h.b16 %v176
    %v598 = vunpack.c.l.b16 %v177
    %v599 = vunpack.c.h.b16 %v177
    %v600 = vunpack.c.l.b16 %v178
    %v601 = vunpack.c.h.b16 %v178
    %v602 = vunpack.c.l.b16 %v179
    %v603 = vunpack.c.h.b16 %v179
    %v604 = vpack.c.b16 %v350, %v348
    %v605 = vpack.c.b16 %v351, %v349
    %v606 = vpack.c.b16 %v354, %v352
    %v607 = vpack.c.b16 %v355, %v353
    %v608 = vpack.c.b16 %v358, %v356
    %v609 = vpack.c.b16 %v359, %v357
    %v610 = vpack.c.b16 %v362, %v360
    %v611 = vpack.c.b16 %v363, %v361
    %v612 = vpack.c.b16 %v366, %v364
    %v613 = vpack.c.b16 %v367, %v365
    %v614 = vpack.c.b16 %v370, %v368
    %v615 = vpack.c.b16 %v371, %v369
    %v616 = vpack.c.b16 %v374, %v372
    %v617 = vpack.c.b16 %v375, %v373
    %v618 = vpack.c.b16 %v378, %v376
    %v619 = vpack.c.b16 %v379, %v377
    %v620 = vpack.c.b16 %v382, %v380
    %v621 = vpack.c.b16 %v383, %v381
    %v622 = vpack.c.b16 %v386, %v384
    %v623 = vpack.c.b16 %v387, %v385
    %v624 = vpack.c.b16 %v390, %v388
    %v625 = vpack.c.b16 %v391, %v389
    %v626 = vpack.c.b16 %v394, %v392
    %v627 = vpack.c.b16 %v395, %v393
    %v628 = vpack.c.b16 %v398, %v396
    %v629 = vpack.c.b16 %v399, %v397
    %v630 = vpack.c.b16 %v402, %v400
    %v631 = vpack.c.b16 %v403, %v401
    %v632 = vpack.c.b16 %v406, %v404
    %v633 = vpack.c.b16 %v407, %v405
    %v634 = vpack.c.b16 %v410, %v408
    %v635 = vpack.c.b16 %v411, %v409
    %v636 = vpack.c.b16 %v414, %v412
    %v637 = vpack.c.b16 %v415, %v413
    %v638 = vpack.c.b16 %v418, %v416
    %v639 = vpack.c.b16 %v419, %v417
    %v640 = vpack.c.b16 %v422, %v420
    %v641 = vpack.c.b16 %v423, %v421
    %v642 = vpack.c.b16 %v426, %v424
    %v643 = vpack.c.b16 %v427, %v425
    %v644 = vpack.c.b16 %v430, %v428
    %v645 = vpack.c.b16 %v431, %v429
    %v646 = vpack.c.b16 %v434, %v432
    %v647 = vpack.c.b16 %v435, %v433
    %v648 = vpack.c.b16 %v438, %v436
    %v649 = vpack.c.b16 %v439, %v437
    %v650 = vpack.c.b16 %v442, %v440
    %v651 = vpack.c.b16 %v443, %v441
    %v652 = vpack.c.b16 %v446, %v444
    %v653 = vpack.c.b16 %v447, %v445
    %v654 = vpack.c.b16 %v450, %v448
    %v655 = vpack.c.b16 %v451, %v449
    %v656 = vpack.c.b16 %v454, %v452
    %v657 = vpack.c.b16 %v455, %v453
    %v658 = vpack.c.b16 %v458, %v456
    %v659 = vpack.c.b16 %v459, %v457
    %v660 = vpack.c.b16 %v462, %v460
    %v661 = vpack.c.b16 %v463, %v461
    %v662 = vpack.c.b16 %v466, %v464
    %v663 = vpack.c.b16 %v467, %v465
    %v664 = vpack.c.b16 %v470, %v468
    %v665 = vpack.c.b16 %v471, %v469
    %v666 = vpack.c.b16 %v474, %v472
    %v667 = vpack.c.b16 %v475, %v473
    %v668 = vpack.c.b16 %v478, %v476
    %v669 = vpack.c.b16 %v479, %v477
    %v670 = vpack.c.b16 %v482, %v480
    %v671 = vpack.c.b16 %v483, %v481
    %v672 = vpack.c.b16 %v486, %v484
    %v673 = vpack.c.b16 %v487, %v485
    %v674 = vpack.c.b16 %v490, %v488
    %v675 = vpack.c.b16 %v491, %v489
    %v676 = vpack.c.b16 %v494, %v492
    %v677 = vpack.c.b16 %v495, %v493
    %v678 = vpack.c.b16 %v498, %v496
    %v679 = vpack.c.b16 %v499, %v497
    %v680 = vpack.c.b16 %v502, %v500
    %v681 = vpack.c.b16 %v503, %v501
    %v682 = vpack.c.b16 %v506, %v504
    %v683 = vpack.c.b16 %v507, %v505
    %v684 = vpack.c.b16 %v510, %v508
    %v685 = vpack.c.b16 %v511, %v509
    %v686 = vpack.c.b16 %v514, %v512
    %v687 = vpack.c.b16 %v515, %v513
    %v688 = vpack.c.b16 %v518, %v516
    %v689 = vpack.c.b16 %v519, %v517
    %v690 = vpack.c.b16 %v522, %v520
    %v691 = vpack.c.b16 %v523, %v521
    %v692 = vpack.c.b16 %v526, %v524
    %v693 = vpack.c.b16 %v527, %v525
    %v694 = vpack.c.b16 %v530, %v528
    %v695 = vpack.c.b16 %v531, %v529
    %v696 = vpack.c.b16 %v534, %v532
    %v697 = vpack.c.b16 %v535, %v533
    %v698 = vpack.c.b16 %v538, %v536
    %v699 = vpack.c.b16 %v539, %v537
    %v700 = vpack.c.b16 %v542, %v540
    %v701 = vpack.c.b16 %v543, %v541
    %v702 = vpack.c.b16 %v546, %v544
    %v703 = vpack.c.b16 %v547, %v545
    %v704 = vpack.c.b16 %v550, %v548
    %v705 = vpack.c.b16 %v551, %v549
    %v706 = vpack.c.b16 %v554, %v552
    %v707 = vpack.c.b16 %v555, %v553
    %v708 = vpack.c.b16 %v558, %v556
    %v709 = vpack.c.b16 %v559, %v557
    %v710 = vpack.c.b16 %v562, %v560
    %v711 = vpack.c.b16 %v563, %v561
    %v712 = vpack.c.b16 %v566, %v564
    %v713 = vpack.c.b16 %v567, %v565
    %v714 = vpack.c.b16 %v570, %v568
    %v715 = vpack.c.b16 %v571, %v569
    %v716 = vpack.c.b16 %v574, %v572
    %v717 = vpack.c.b16 %v575, %v573
    %v718 = vpack.c.b16 %v578, %v576
    %v719 = vpack.c.b16 %v579, %v577
    %v720 = vpack.c.b16 %v582, %v580
    %v721 = vpack.c.b16 %v583, %v581
    %v722 = vpack.c.b16 %v586, %v584
    %v723 = vpack.c.b16 %v587, %v585
    %v724 = vpack.c.b16 %v590, %v588
    %v725 = vpack.c.b16 %v591, %v589
    %v726 = vpack.c.b16 %v594, %v592
    %v727 = vpack.c.b16 %v595, %v593
    %v728 = vpack.c.b16 %v598, %v596
    %v729 = vpack.c.b16 %v599, %v597
    %v730 = vpack.c.b16 %v602, %v600
    %v731 = vpack.c.b16 %v603, %v601
    %860 = vmatpush.bf16.msra.mxu0 %v618
    %861 = vmatpush.bf16.msra.mxu0 %v616
    %862 = vmatpush.bf16.msra.mxu0 %v614
    %863 = vmatpush.bf16.msra.mxu0 %v612
    %864 = vmatpush.bf16.msra.mxu0 %v610
    %865 = vmatpush.bf16.msra.mxu0 %v608
    %866 = vmatpush.bf16.msra.mxu0 %v606
    %867 = vmatpush.bf16.msra.mxu0 %v604
    %868 = vmatmul.bf16.gmra.mxu0 %v204
    %v869 = vpop.f32.mrf.mxu0
    %v870 = vadd.f32 0.0, %v869
    %v871 = vpop.f32.mrf.mxu0
    %v872 = vadd.f32 0.0, %v871
    %873 = vdwg.mxu0
    %874 = vmatpush.bf16.msra.mxu0 %v634
    %875 = vmatpush.bf16.msra.mxu0 %v632
    %876 = vmatpush.bf16.msra.mxu0 %v630
    %877 = vmatpush.bf16.msra.mxu0 %v628
    %878 = vmatpush.bf16.msra.mxu0 %v626
    %879 = vmatpush.bf16.msra.mxu0 %v624
    %880 = vmatpush.bf16.msra.mxu0 %v622
    %881 = vmatpush.bf16.msra.mxu0 %v620
    %882 = vmatmul.bf16.gmra.mxu0 %v205
    %v883 = vpop.f32.mrf.mxu0
    %v884 = vadd.f32 %v870, %v883
    %v885 = vpop.f32.mrf.mxu0
    %v886 = vadd.f32 %v872, %v885
    %887 = vdwg.mxu0
    %888 = vmatpush.bf16.msra.mxu0 %v650
    %889 = vmatpush.bf16.msra.mxu0 %v648
    %890 = vmatpush.bf16.msra.mxu0 %v646
    %891 = vmatpush.bf16.msra.mxu0 %v644
    %892 = vmatpush.bf16.msra.mxu0 %v642
    %893 = vmatpush.bf16.msra.mxu0 %v640
    %894 = vmatpush.bf16.msra.mxu0 %v638
    %895 = vmatpush.bf16.msra.mxu0 %v636
    %896 = vmatmul.bf16.gmra.mxu0 %v206
    %v897 = vpop.f32.mrf.mxu0
    %v898 = vadd.f32 %v884, %v897
    %v899 = vpop.f32.mrf.mxu0
    %v900 = vadd.f32 %v886, %v899
    %901 = vdwg.mxu0
    %902 = vmatpush.bf16.msra.mxu0 %v666
    %903 = vmatpush.bf16.msra.mxu0 %v664
    %904 = vmatpush.bf16.msra.mxu0 %v662
    %905 = vmatpush.bf16.msra.mxu0 %v660
    %906 = vmatpush.bf16.msra.mxu0 %v658
    %907 = vmatpush.bf16.msra.mxu0 %v656
    %908 = vmatpush.bf16.msra.mxu0 %v654
    %909 = vmatpush.bf16.msra.mxu0 %v652
    %910 = vmatmul.bf16.gmra.mxu0 %v207
    %v911 = vpop.f32.mrf.mxu0
    %v912 = vadd.f32 %v898, %v911
    %v913 = vpop.f32.mrf.mxu0
    %v914 = vadd.f32 %v900, %v913
    %915 = vdwg.mxu0
    %916 = vmatpush.bf16.msra.mxu0 %v682
    %917 = vmatpush.bf16.msra.mxu0 %v680
    %918 = vmatpush.bf16.msra.mxu0 %v678
    %919 = vmatpush.bf16.msra.mxu0 %v676
    %920 = vmatpush.bf16.msra.mxu0 %v674
    %921 = vmatpush.bf16.msra.mxu0 %v672
    %922 = vmatpush.bf16.msra.mxu0 %v670
    %923 = vmatpush.bf16.msra.mxu0 %v668
    %924 = vmatmul.bf16.gmra.mxu0 %v208
    %v925 = vpop.f32.mrf.mxu0
    %v926 = vadd.f32 %v912, %v925
    %v927 = vpop.f32.mrf.mxu0
    %v928 = vadd.f32 %v914, %v927
    %929 = vdwg.mxu0
    %930 = vmatpush.bf16.msra.mxu0 %v698
    %931 = vmatpush.bf16.msra.mxu0 %v696
    %932 = vmatpush.bf16.msra.mxu0 %v694
    %933 = vmatpush.bf16.msra.mxu0 %v692
    %934 = vmatpush.bf16.msra.mxu0 %v690
    %935 = vmatpush.bf16.msra.mxu0 %v688
    %936 = vmatpush.bf16.msra.mxu0 %v686
    %937 = vmatpush.bf16.msra.mxu0 %v684
    %938 = vmatmul.bf16.gmra.mxu0 %v209
    %v939 = vpop.f32.mrf.mxu0
    %v940 = vadd.f32 %v926, %v939
    %v941 = vpop.f32.mrf.mxu0
    %v942 = vadd.f32 %v928, %v941
    %943 = vdwg.mxu0
    %944 = vmatpush.bf16.msra.mxu0 %v714
    %945 = vmatpush.bf16.msra.mxu0 %v712
    %946 = vmatpush.bf16.msra.mxu0 %v710
    %947 = vmatpush.bf16.msra.mxu0 %v708
    %948 = vmatpush.bf16.msra.mxu0 %v706
    %949 = vmatpush.bf16.msra.mxu0 %v704
    %950 = vmatpush.bf16.msra.mxu0 %v702
    %951 = vmatpush.bf16.msra.mxu0 %v700
    %952 = vmatmul.bf16.gmra.mxu0 %v210
    %v953 = vpop.f32.mrf.mxu0
    %v954 = vadd.f32 %v940, %v953
    %v955 = vpop.f32.mrf.mxu0
    %v956 = vadd.f32 %v942, %v955
    %957 = vdwg.mxu0
    %958 = vmatpush.bf16.msra.mxu0 %v730
    %959 = vmatpush.bf16.msra.mxu0 %v728
    %960 = vmatpush.bf16.msra.mxu0 %v726
    %961 = vmatpush.bf16.msra.mxu0 %v724
    %962 = vmatpush.bf16.msra.mxu0 %v722
    %963 = vmatpush.bf16.msra.mxu0 %v720
    %964 = vmatpush.bf16.msra.mxu0 %v718
    %965 = vmatpush.bf16.msra.mxu0 %v716
    %966 = vmatmul.bf16.gmra.mxu0 %v211
    %v967 = vpop.f32.mrf.mxu0
    %v968 = vadd.f32 %v954, %v967
    %v969 = vpop.f32.mrf.mxu0
    %v970 = vadd.f32 %v956, %v969
    %971 = vdwg.mxu0
    %972 = vmatpush.bf16.msra.mxu0 %v619
    %973 = vmatpush.bf16.msra.mxu0 %v617
    %974 = vmatpush.bf16.msra.mxu0 %v615
    %975 = vmatpush.bf16.msra.mxu0 %v613
    %976 = vmatpush.bf16.msra.mxu0 %v611
    %977 = vmatpush.bf16.msra.mxu0 %v609
    %978 = vmatpush.bf16.msra.mxu0 %v607
    %979 = vmatpush.bf16.msra.mxu0 %v605
    %980 = vmatmul.bf16.gmra.mxu0 %v204
    %v981 = vpop.f32.mrf.mxu0
    %v982 = vadd.f32 0.0, %v981
    %v983 = vpop.f32.mrf.mxu0
    %v984 = vadd.f32 0.0, %v983
    %985 = vdwg.mxu0
    %986 = vmatpush.bf16.msra.mxu0 %v635
    %987 = vmatpush.bf16.msra.mxu0 %v633
    %988 = vmatpush.bf16.msra.mxu0 %v631
    %989 = vmatpush.bf16.msra.mxu0 %v629
    %990 = vmatpush.bf16.msra.mxu0 %v627
    %991 = vmatpush.bf16.msra.mxu0 %v625
    %992 = vmatpush.bf16.msra.mxu0 %v623
    %993 = vmatpush.bf16.msra.mxu0 %v621
    %994 = vmatmul.bf16.gmra.mxu0 %v205
    %v995 = vpop.f32.mrf.mxu0
    %v996 = vadd.f32 %v982, %v995
    %v997 = vpop.f32.mrf.mxu0
    %v998 = vadd.f32 %v984, %v997
    %999 = vdwg.mxu0
    %1000 = vmatpush.bf16.msra.mxu0 %v651
    %1001 = vmatpush.bf16.msra.mxu0 %v649
    %1002 = vmatpush.bf16.msra.mxu0 %v647
    %1003 = vmatpush.bf16.msra.mxu0 %v645
    %1004 = vmatpush.bf16.msra.mxu0 %v643
    %1005 = vmatpush.bf16.msra.mxu0 %v641
    %1006 = vmatpush.bf16.msra.mxu0 %v639
    %1007 = vmatpush.bf16.msra.mxu0 %v637
    %1008 = vmatmul.bf16.gmra.mxu0 %v206
    %v1009 = vpop.f32.mrf.mxu0
    %v1010 = vadd.f32 %v996, %v1009
    %v1011 = vpop.f32.mrf.mxu0
    %v1012 = vadd.f32 %v998, %v1011
    %1013 = vdwg.mxu0
    %1014 = vmatpush.bf16.msra.mxu0 %v667
    %1015 = vmatpush.bf16.msra.mxu0 %v665
    %1016 = vmatpush.bf16.msra.mxu0 %v663
    %1017 = vmatpush.bf16.msra.mxu0 %v661
    %1018 = vmatpush.bf16.msra.mxu0 %v659
    %1019 = vmatpush.bf16.msra.mxu0 %v657
    %1020 = vmatpush.bf16.msra.mxu0 %v655
    %1021 = vmatpush.bf16.msra.mxu0 %v653
    %1022 = vmatmul.bf16.gmra.mxu0 %v207
    %v1023 = vpop.f32.mrf.mxu0
    %v1024 = vadd.f32 %v1010, %v1023
    %v1025 = vpop.f32.mrf.mxu0
    %v1026 = vadd.f32 %v1012, %v1025
    %1027 = vdwg.mxu0
    %1028 = vmatpush.bf16.msra.mxu0 %v683
    %1029 = vmatpush.bf16.msra.mxu0 %v681
    %1030 = vmatpush.bf16.msra.mxu0 %v679
    %1031 = vmatpush.bf16.msra.mxu0 %v677
    %1032 = vmatpush.bf16.msra.mxu0 %v675
    %1033 = vmatpush.bf16.msra.mxu0 %v673
    %1034 = vmatpush.bf16.msra.mxu0 %v671
    %1035 = vmatpush.bf16.msra.mxu0 %v669
    %1036 = vmatmul.bf16.gmra.mxu0 %v208
    %v1037 = vpop.f32.mrf.mxu0
    %v1038 = vadd.f32 %v1024, %v1037
    %v1039 = vpop.f32.mrf.mxu0
    %v1040 = vadd.f32 %v1026, %v1039
    %1041 = vdwg.mxu0
    %1042 = vmatpush.bf16.msra.mxu0 %v699
    %1043 = vmatpush.bf16.msra.mxu0 %v697
    %1044 = vmatpush.bf16.msra.mxu0 %v695
    %1045 = vmatpush.bf16.msra.mxu0 %v693
    %1046 = vmatpush.bf16.msra.mxu0 %v691
    %1047 = vmatpush.bf16.msra.mxu0 %v689
    %1048 = vmatpush.bf16.msra.mxu0 %v687
    %1049 = vmatpush.bf16.msra.mxu0 %v685
    %1050 = vmatmul.bf16.gmra.mxu0 %v209
    %v1051 = vpop.f32.mrf.mxu0
    %v1052 = vadd.f32 %v1038, %v1051
    %v1053 = vpop.f32.mrf.mxu0
    %v1054 = vadd.f32 %v1040, %v1053
    %1055 = vdwg.mxu0
    %1056 = vmatpush.bf16.msra.mxu0 %v715
    %1057 = vmatpush.bf16.msra.mxu0 %v713
    %1058 = vmatpush.bf16.msra.mxu0 %v711
    %1059 = vmatpush.bf16.msra.mxu0 %v709
    %1060 = vmatpush.bf16.msra.mxu0 %v707
    %1061 = vmatpush.bf16.msra.mxu0 %v705
    %1062 = vmatpush.bf16.msra.mxu0 %v703
    %1063 = vmatpush.bf16.msra.mxu0 %v701
    %1064 = vmatmul.bf16.gmra.mxu0 %v210
    %v1065 = vpop.f32.mrf.mxu0
    %v1066 = vadd.f32 %v1052, %v1065
    %v1067 = vpop.f32.mrf.mxu0
    %v1068 = vadd.f32 %v1054, %v1067
    %1069 = vdwg.mxu0
    %1070 = vmatpush.bf16.msra.mxu0 %v731
    %1071 = vmatpush.bf16.msra.mxu0 %v729
    %1072 = vmatpush.bf16.msra.mxu0 %v727
    %1073 = vmatpush.bf16.msra.mxu0 %v725
    %1074 = vmatpush.bf16.msra.mxu0 %v723
    %1075 = vmatpush.bf16.msra.mxu0 %v721
    %1076 = vmatpush.bf16.msra.mxu0 %v719
    %1077 = vmatpush.bf16.msra.mxu0 %v717
    %1078 = vmatmul.bf16.gmra.mxu0 %v211
    %v1079 = vpop.f32.mrf.mxu0
    %v1080 = vadd.f32 %v1066, %v1079
    %v1081 = vpop.f32.mrf.mxu0
    %v1082 = vadd.f32 %v1068, %v1081
    %1083 = vdwg.mxu0
    %vm1084 = vcmp.gt.f32.partialorder %v968, 0.0
    %vm1085 = vcmp.gt.f32.partialorder %v1080, 0.0
    %vm1086 = vcmp.gt.f32.partialorder %v970, 0.0
    %vm1087 = vcmp.gt.f32.partialorder %v1082, 0.0
    %v1088 = vsel %vm1084, 1.0, -1.0
    %v1089 = vsel %vm1085, 1.0, -1.0
    %v1090 = vsel %vm1086, 1.0, -1.0
    %v1091 = vsel %vm1087, 1.0, -1.0
    %v1092 = vpack.c.bf16 %v1089, %v1088
    %v1093 = vpack.c.bf16 %v1091, %v1090
    %1094 = vst [vmem:[#allocation7] sm:$0xff] %v1092
    %1095 = vst [vmem:[#allocation7 + $0x8] sm:$0xff] %v1093
    // Predicated region
    $region18: #{tpu_custom_call.1} parent=1 // pred_check
      _
    $region19: #{tpu_custom_call.1} parent=1 // pred_check_branch
      %1097 = sbr.rel (0) target = $region21
    $region20: #{tpu_custom_call.1} parent=1 // pred_region
      %1099 = vsyncadd [#allocation4], 0
      %s1100 = sshll.u32 [#allocation7], 4
      %s1101 = int_to_ptr.vmem [resolvable:$true] %s1100
      %s1102 = sshll.u32 %s2, 4
      %s1103 = int_to_ptr.hbm [resolvable:$true] %s1102
      %1108 = dma.vmem_to_hbm [thread:$0]  %s1101, 256, %s1103, [#allocation4], 128, 128, 8
    $region21: #{tpu_custom_call.1} parent=1 // pred_fallthru
      _
    // Predicated region
    $region22: #{tpu_custom_call.1} parent=1 // pred_check
      _
    $region23: #{tpu_custom_call.1} parent=1 // pred_check_branch
      %1110 = sbr.rel (0) target = $region25
    $region24: #{tpu_custom_call.1} parent=1 // pred_region
      %1112 = dma.done [#allocation4], 256
    $region25: #{tpu_custom_call.1} parent=1 // pred_fallthru
      _
    %1113 = vsyncpa [#allocation3], 1
    %1114 = vsyncpa [#allocation6], 1
    %1115 = vsyncpa [#allocation4], 1

</llo_original>
